<compile_context>
chip_gen: v5e
topology: v5e:2x2
jax: 0.10.0
libtpu: 0.0.40
codegen_flags: <defaults>
</compile_context>

<pallas_src>
import jax
import jax.numpy as jnp
from jax import lax
from jax.experimental import pallas as pl
from jax.experimental.pallas import tpu as pltpu


def _deconv_innorm_kernel(x_ref, w_ref, gb_ref, o_ref):
    # x_ref : (K*K*Cin, P)   P = Hout*Wout, lane-dense
    # w_ref : (Cout, K*K*Cin)
    # gb_ref: (Cout, 2)      column 0 = gamma, column 1 = beta (f32)
    # o_ref : (Cout, P)
    # Single MXU contraction over K*K*Cin; f32 accumulation.
    acc = jnp.dot(w_ref[...], x_ref[...],
                  preferred_element_type=jnp.float32)          # (Cout, P)

    # InstanceNorm2d: biased variance over the spatial axis, eps=1e-5.
    inv_p = 1.0 / acc.shape[1]
    mean = jnp.sum(acc, axis=1, keepdims=True) * inv_p          # (Cout, 1)
    cent = acc - mean
    var = jnp.sum(cent * cent, axis=1, keepdims=True) * inv_p   # (Cout, 1)
    scale = lax.rsqrt(var + 1e-5) * gb_ref[:, 0:1]              # (Cout, 1)
    shift = gb_ref[:, 1:2]                                      # (Cout, 1)
    o_ref[...] = (cent * scale + shift).astype(o_ref.dtype)


def deconv_layer_forward(x_nchw, w, b, gamma, beta, *, stride, output_padding,
                         compute_dtype=jnp.float32):
    """DeconvLayer.forward: ConvTranspose2d(K, stride, padding=K//2,
    output_padding, bias) followed by InstanceNorm2d(affine=True).

    `compute_dtype` controls the matmul operand dtype (bf16 halves HBM/VMEM
    bytes for the dominant operand on v6e/v7x); norm math is always f32.
    The ConvTranspose bias `b` is accepted for API fidelity but intentionally
    unused: a per-channel constant cancels exactly under InstanceNorm's mean
    subtraction, so dropping it saves a broadcast+add, a DMA and a VMEM buffer
    with identical semantics (up to fp rounding).
    """
    del b  # exact no-op under the following InstanceNorm
    n, cin, h, w_in = x_nchw.shape
    cin_w, cout, kh, kw = w.shape
    assert cin == cin_w and kh == kw
    k = kh
    padding = k // 2
    hout = (h - 1) * stride - 2 * padding + k + output_padding
    wout = (w_in - 1) * stride - 2 * padding + k + output_padding
    p = hout * wout
    kkc = k * k * cin

    pad_lo = k - 1 - padding
    pad_hi = k - 1 - padding + output_padding

    # ---- wrapper glue (plain XLA): dilate + zero-pad the input, then build
    # the K*K spatially-shifted taps folded into one contraction axis, laid
    # out lane-dense: (N, K*K*Cin, Hout*Wout).
    # TODO(synk): at large shapes, build the taps in-kernel from a
    # VMEM-resident padded block to avoid the K*K-fold HBM duplication.
    x_c = x_nchw.astype(compute_dtype)
    x_pad = lax.pad(
        x_c, jnp.array(0.0, compute_dtype),
        ((0, 0, 0), (0, 0, 0),
         (pad_lo, pad_hi, stride - 1),
         (pad_lo, pad_hi, stride - 1)))                         # (N, Cin, Hp, Wp)
    taps = [x_pad[:, :, i:i + hout, j:j + wout]
            for i in range(k) for j in range(k)]
    x_taps = jnp.stack(taps, axis=1).reshape(n, kkc, p)         # (N, KKC, P)

    # Equivalent forward-conv weight (spatial flip + (in,out) swap), folded to
    # the same contraction order: (Cout, K*K*Cin).
    w_taps = jnp.transpose(jnp.flip(w, axis=(2, 3)), (1, 2, 3, 0)).reshape(
        cout, kkc).astype(compute_dtype)

    # gamma/beta packed into a single tiny f32 operand: (Cout, 2).
    gb = jnp.stack([gamma.astype(jnp.float32),
                    beta.astype(jnp.float32)], axis=1)

    out = pl.pallas_call(
        _deconv_innorm_kernel,
        out_shape=jax.ShapeDtypeStruct((n, cout, p), jnp.float32),
        grid=(n,),
        in_specs=[
            # batch dim squeezed; kernel sees clean 2D refs, P lane-dense.
            pl.BlockSpec((None, kkc, p), lambda i: (i, 0, 0)),
            pl.BlockSpec((cout, kkc), lambda i: (0, 0)),
            pl.BlockSpec((cout, 2), lambda i: (0, 0)),
        ],
        out_specs=pl.BlockSpec((None, cout, p), lambda i: (i, 0, 0)),
        compiler_params=pltpu.CompilerParams(
            dimension_semantics=("parallel",)),
    )(x_taps, w_taps, gb)

    # (N, Cout, Hout*Wout) is already channel-major: reshape straight to NCHW.
    return out.reshape(n, cout, hout, wout)


def _reference(x_nchw, w, b, gamma, beta, *, stride, output_padding):
    # Pure-JAX reference (ConvTranspose2d via dilated conv + InstanceNorm2d),
    # faithful to PyTorch (bias included; it cancels under the norm).
    cin, cout, k, _ = w.shape
    padding = k // 2
    pad_lo = k - 1 - padding
    pad_hi = k - 1 - padding + output_padding
    w_conv = jnp.transpose(jnp.flip(w, axis=(2, 3)), (1, 0, 2, 3))  # (O,I,kh,kw)
    y = lax.conv_general_dilated(
        x_nchw, w_conv, window_strides=(1, 1),
        padding=[(pad_lo, pad_hi), (pad_lo, pad_hi)],
        lhs_dilation=(stride, stride),
        dimension_numbers=("NCHW", "OIHW", "NCHW"))
    y = y + b[None, :, None, None]
    mean = jnp.mean(y, axis=(2, 3), keepdims=True)
    var = jnp.mean((y - mean) ** 2, axis=(2, 3), keepdims=True)
    yn = (y - mean) * lax.rsqrt(var + 1e-5)
    return yn * gamma[None, :, None, None] + beta[None, :, None, None]


if __name__ == "__main__":
    # DeconvLayer(in_channels=4, out_channels=8, kernel_size=3, stride=2,
    #             output_padding=1); input (N=2, C=4, H=8, W=8) -> (2, 8, 16, 16)
    N, CIN, COUT, H, W = 2, 4, 8, 8, 8
    K, STRIDE, OUTPAD = 3, 2, 1

    key = jax.random.PRNGKey(0)
    k1, k2, k3, k4, k5 = jax.random.split(key, 5)
    x = jax.random.normal(k1, (N, CIN, H, W), jnp.float32)
    # ConvTranspose2d weight shape: (in_channels, out_channels, kH, kW)
    w = 0.1 * jax.random.normal(k2, (CIN, COUT, K, K), jnp.float32)
    b = 0.1 * jax.random.normal(k3, (COUT,), jnp.float32)
    gamma = 1.0 + 0.1 * jax.random.normal(k4, (COUT,), jnp.float32)
    beta = 0.1 * jax.random.normal(k5, (COUT,), jnp.float32)

    ref = _reference(x, w, b, gamma, beta, stride=STRIDE, output_padding=OUTPAD)

    # f32 operand path: tight check against the PyTorch-faithful reference.
    out = deconv_layer_forward(x, w, b, gamma, beta,
                               stride=STRIDE, output_padding=OUTPAD)
    out = jax.block_until_ready(out)
    assert out.shape == ref.shape == (N, COUT, 16, 16), (out.shape, ref.shape)
    err = float(jnp.max(jnp.abs(out - ref)))
    assert jnp.allclose(out, ref, atol=2e-3, rtol=2e-3), err

    # bf16 matmul-operand path (v6e/v7x byte-count win); f32 accumulation and
    # f32 norm math keep it well inside a loose tolerance.
    out_bf16 = deconv_layer_forward(x, w, b, gamma, beta,
                                    stride=STRIDE, output_padding=OUTPAD,
                                    compute_dtype=jnp.bfloat16)
    out_bf16 = jax.block_until_ready(out_bf16)
    err_bf16 = float(jnp.max(jnp.abs(out_bf16 - ref)))
    assert jnp.allclose(out_bf16, ref, atol=5e-2, rtol=5e-2), err_bf16

    print("KERNEL_OK")
</pallas_src>

<mosaic_0001>
module attributes {stable_mosaic.version = 11 : i64} {
  func.func @_deconv_innorm_kernel(%arg0: i32, %arg1: memref<1x36x256xf32, #tpu.memory_space<vmem>>, %arg2: memref<8x36xf32, #tpu.memory_space<vmem>>, %arg3: memref<8x2xf32, #tpu.memory_space<vmem>>, %arg4: memref<1x8x256xf32, #tpu.memory_space<vmem>>) attributes {dimension_semantics = [#tpu.dimension_semantics<parallel>], iteration_bounds = array<i64: 2>, scalar_prefetch = 0 : i64, scratch_operands = 0 : i64, tpu.core_type = #tpu.core_type<tc>, window_params = [{transform_indices = @transform_0, window_bounds = array<i64: 1, 36, 256>}, {pipeline_mode = #tpu.pipeline_mode<synchronous>, transform_indices = @transform_1, window_bounds = array<i64: 8, 36>}, {pipeline_mode = #tpu.pipeline_mode<synchronous>, transform_indices = @transform_2, window_bounds = array<i64: 8, 2>}, {transform_indices = @transform_3, window_bounds = array<i64: 1, 8, 256>}]} {
    %c0 = arith.constant 0 : index
    %c0_0 = arith.constant 0 : index
    %0 = vector.load %arg2[%c0, %c0_0] : memref<8x36xf32, #tpu.memory_space<vmem>>, vector<8x36xf32>
    %c0_1 = arith.constant 0 : index
    %c0_2 = arith.constant 0 : index
    %c0_3 = arith.constant 0 : index
    %1 = vector.load %arg1[%c0_1, %c0_2, %c0_3] : memref<1x36x256xf32, #tpu.memory_space<vmem>>, vector<1x36x256xf32>
    %2 = vector.shape_cast %1 : vector<1x36x256xf32> to vector<36x256xf32>
    %cst = arith.constant dense<0.000000e+00> : vector<8x256xf32>
    %3 = tpu.matmul %0, %2, %cst {dimension_numbers = #tpu.dot_dimension_numbers<[1], [0], [0], [1], [0, 0, 1, 1], [], []>} : vector<8x36xf32>, vector<36x256xf32>, vector<8x256xf32> -> vector<8x256xf32>
    %cst_4 = arith.constant dense<0.000000e+00> : vector<8xf32>
    %4 = vector.multi_reduction <add>, %3, %cst_4 [1] : vector<8x256xf32> to vector<8xf32>
    %5 = vector.shape_cast %4 : vector<8xf32> to vector<8x1xf32>
    %cst_5 = arith.constant 3.906250e-03 : f32
    %6 = vector.broadcast %cst_5 : f32 to vector<8x1xf32>
    %7 = arith.mulf %5, %6 : vector<8x1xf32>
    %8 = vector.broadcast %7 : vector<8x1xf32> to vector<8x256xf32>
    %9 = arith.subf %3, %8 : vector<8x256xf32>
    %10 = arith.mulf %9, %9 : vector<8x256xf32>
    %cst_6 = arith.constant dense<0.000000e+00> : vector<8xf32>
    %11 = vector.multi_reduction <add>, %10, %cst_6 [1] : vector<8x256xf32> to vector<8xf32>
    %12 = vector.shape_cast %11 : vector<8xf32> to vector<8x1xf32>
    %cst_7 = arith.constant 3.906250e-03 : f32
    %13 = vector.broadcast %cst_7 : f32 to vector<8x1xf32>
    %14 = arith.mulf %12, %13 : vector<8x1xf32>
    %cst_8 = arith.constant 9.99999974E-6 : f32
    %15 = vector.broadcast %cst_8 : f32 to vector<8x1xf32>
    %16 = arith.addf %14, %15 : vector<8x1xf32>
    %17 = math.rsqrt %16 : vector<8x1xf32>
    %c0_9 = arith.constant 0 : index
    %c0_10 = arith.constant 0 : index
    %18 = vector.load %arg3[%c0_9, %c0_10] : memref<8x2xf32, #tpu.memory_space<vmem>>, vector<8x1xf32>
    %19 = arith.mulf %17, %18 : vector<8x1xf32>
    %c0_11 = arith.constant 0 : index
    %c1 = arith.constant 1 : index
    %20 = vector.load %arg3[%c0_11, %c1] : memref<8x2xf32, #tpu.memory_space<vmem>>, vector<8x1xf32>
    %21 = vector.broadcast %19 : vector<8x1xf32> to vector<8x256xf32>
    %22 = arith.mulf %9, %21 : vector<8x256xf32>
    %23 = vector.broadcast %20 : vector<8x1xf32> to vector<8x256xf32>
    %24 = arith.addf %22, %23 : vector<8x256xf32>
    %c0_12 = arith.constant 0 : index
    %c0_13 = arith.constant 0 : index
    %c0_14 = arith.constant 0 : index
    %25 = vector.load %arg4[%c0_12, %c0_13, %c0_14] : memref<1x8x256xf32, #tpu.memory_space<vmem>>, vector<1x8x256xf32>
    %26 = vector.shape_cast %25 : vector<1x8x256xf32> to vector<8x256xf32>
    %27 = vector.shape_cast %24 : vector<8x256xf32> to vector<1x8x256xf32>
    tpu.vector_store %arg4[%c0_12, %c0_13, %c0_14], %27 {strides = array<i32>} : memref<1x8x256xf32, #tpu.memory_space<vmem>>, vector<1x8x256xf32>,
    return
  }
  func.func @transform_0(%arg0: i32) -> (i32, i32, i32) {
    %c0_i32 = arith.constant 0 : i32
    %c0_i32_0 = arith.constant 0 : i32
    %c0_i32_1 = arith.constant 0 : i32
    return %arg0, %c0_i32, %c0_i32_0 : i32, i32, i32
  }
  func.func @transform_1(%arg0: i32) -> (i32, i32) {
    %c0_i32 = arith.constant 0 : i32
    %c0_i32_0 = arith.constant 0 : i32
    %c0_i32_1 = arith.constant 0 : i32
    return %c0_i32, %c0_i32_0 : i32, i32
  }
  func.func @transform_2(%arg0: i32) -> (i32, i32) {
    %c0_i32 = arith.constant 0 : i32
    %c0_i32_0 = arith.constant 0 : i32
    %c0_i32_1 = arith.constant 0 : i32
    return %c0_i32, %c0_i32_0 : i32, i32
  }
  func.func @transform_3(%arg0: i32) -> (i32, i32, i32) {
    %c0_i32 = arith.constant 0 : i32
    %c0_i32_0 = arith.constant 0 : i32
    %c0_i32_1 = arith.constant 0 : i32
    return %arg0, %c0_i32, %c0_i32_0 : i32, i32, i32
  }
}

</mosaic_0001>

<llo_original>
// kernel: tpu_custom_call.1
$region0: #{tpu_custom_call.1}
  #allocation0 [shape = 'u32[]', space=smem, size = 0x4, offset = 0x4, fixed_abs, tag = 'smem constant byte address 0x4 - core index']
  #allocation1 [shape = 'u32[72,128]{1,0:T(1,128)}', space=vmem, size = 0x9000, scoped, tag = 'internal scratch']
  %s0 = inlined_call_operand.vmem [shape: f32[2,36,256], index: 0, kind: input, shape index: {}]
  %s1 = inlined_call_operand.vmem [shape: f32[8,36], index: 1, kind: input, shape index: {}]
  %s2 = inlined_call_operand.vmem [shape: f32[8,2], index: 2, kind: input, shape index: {}]
  %s3 = inlined_call_operand.hbm [shape: f32[2,8,256], index: 3, kind: output, shape index: {}]
  %s4 = sld [smem:[#allocation0]]
  $region45: #{tpu_custom_call.1} parent=0
    _
  %s6 = ssub.s32 1, %s4
  %s7 = scalar_select 0, %s6, %s4
  $region1: #{tpu_custom_call.1} parent=0
    #allocation2 [shape = 'u8[16384]{0}', space=vmem, size = 0x4000, scoped, tag = 'output window, operand 0']
    #allocation3 [shape = 's32[2]{0}', space=sflag, size = 0x8, scoped, tag = 'scoped memory for tpu_custom_call.1']
    %8 = vsyncpa [#allocation3], 0
    %s9 = scalar_lea.sflag [#allocation3], 1
    %10 = vsyncpa %s9, 0
    loop: start=0, step=1, limit=4
    $region2: #{tpu_custom_call.1} parent=1 // loop_pre_header
      _
    $region3: #{tpu_custom_call.1} parent=1 // loop_header
      %s12 = sphi 0, %s16
      %p13 = scmp.ge.s32.totalorder %s12, 4
      %s22 = sphi 0, %s24
      %s25 = sphi 0, %s22
      %s26 = sphi 0, %s25
      %s42 = sphi 0, %s26
      %s46 = sphi 0, %s46
      %s48 = sphi 0, %s46
      %s49 = sphi 0, %s48
      %s63 = sphi 0, %s49
      %s67 = sphi 0, %s67
      %s69 = sphi 0, %s67
      %s70 = sphi 0, %s69
      %s84 = sphi 0, %s70
      %s90 = sphi 0, %s92
      %s93 = sphi 0, %s90
      %s94 = sphi 0, %s93
      %s110 = sphi 0, %s94
    $region4: #{tpu_custom_call.1} parent=1 // loop_header_branch
      %15 = sbr.rel (%p13) target = $region8
    $region5: #{tpu_custom_call.1} parent=1 // loop_body
      %s17 = ssub.s32 %s12, 1
      %s18 = ssub.s32 %s12, 2
      %s19 = sadd.s32 %s12, 1
      %s20 = ssub.s32 %s12, %s19
      %p21 = scmp.eq.s32.totalorder %s20, 0
      %s23 = sadd.s32 %s22, 1
      %s24 = scalar_select %p21, %s22, %s23
      %p27 = pneg %p21
      %p28 = scmp.eq.s32.totalorder %s12, 1
      %p29 = por %p27, %p28
      %p30 = scmp.ne.s32.totalorder %s22, %s25
      %p31 = scmp.eq.s32.totalorder %s12, 0
      %p32 = por %p30, %p31
      %p33 = scmp.ne.s32.totalorder %s22, %s25
      %p34 = scmp.eq.s32.totalorder %s17, 1
      %p35 = por %p33, %p34
      %p36 = scmp.ne.s32.totalorder %s25, %s26
      %p37 = scmp.eq.s32.totalorder %s17, 0
      %p38 = por %p36, %p37
      %p39 = scmp.ne.s32.totalorder %s25, %s26
      %p40 = scmp.eq.s32.totalorder %s18, 1
      %p41 = por %p39, %p40
      %p43 = scmp.ne.s32.totalorder %s26, %s42
      %p44 = scmp.eq.s32.totalorder %s18, 0
      %p45 = por %p43, %p44
      %s47 = sadd.s32 %s46, 1
      %p50 = scmp.eq.s32.totalorder %s12, 1
      %p51 = scmp.ne.s32.totalorder %s46, %s48
      %p52 = scmp.eq.s32.totalorder %s12, 0
      %p53 = por %p51, %p52
      %p54 = scmp.ne.s32.totalorder %s46, %s48
      %p55 = scmp.eq.s32.totalorder %s17, 1
      %p56 = por %p54, %p55
      %p57 = scmp.ne.s32.totalorder %s48, %s49
      %p58 = scmp.eq.s32.totalorder %s17, 0
      %p59 = por %p57, %p58
      %p60 = scmp.ne.s32.totalorder %s48, %s49
      %p61 = scmp.eq.s32.totalorder %s18, 1
      %p62 = por %p60, %p61
      %p64 = scmp.ne.s32.totalorder %s49, %s63
      %p65 = scmp.eq.s32.totalorder %s18, 0
      %p66 = por %p64, %p65
      %s68 = sadd.s32 %s67, 1
      %p71 = scmp.eq.s32.totalorder %s12, 1
      %p72 = scmp.ne.s32.totalorder %s67, %s69
      %p73 = scmp.eq.s32.totalorder %s12, 0
      %p74 = por %p72, %p73
      %p75 = scmp.ne.s32.totalorder %s67, %s69
      %p76 = scmp.eq.s32.totalorder %s17, 1
      %p77 = por %p75, %p76
      %p78 = scmp.ne.s32.totalorder %s69, %s70
      %p79 = scmp.eq.s32.totalorder %s17, 0
      %p80 = por %p78, %p79
      %p81 = scmp.ne.s32.totalorder %s69, %s70
      %p82 = scmp.eq.s32.totalorder %s18, 1
      %p83 = por %p81, %p82
      %p85 = scmp.ne.s32.totalorder %s70, %s84
      %p86 = scmp.eq.s32.totalorder %s18, 0
      %p87 = por %p85, %p86
      %s88 = ssub.s32 %s12, %s19
      %p89 = scmp.eq.s32.totalorder %s88, 0
      %s91 = sadd.s32 %s90, 1
      %s92 = scalar_select %p89, %s90, %s91
      %p95 = pneg %p89
      %p96 = scmp.eq.s32.totalorder %s12, 1
      %p97 = por %p95, %p96
      %p98 = scmp.ne.s32.totalorder %s90, %s93
      %p99 = scmp.eq.s32.totalorder %s12, 0
      %p100 = por %p98, %p99
      %p101 = scmp.ne.s32.totalorder %s90, %s93
      %p102 = scmp.eq.s32.totalorder %s17, 1
      %p103 = por %p101, %p102
      %p104 = scmp.ne.s32.totalorder %s93, %s94
      %p105 = scmp.eq.s32.totalorder %s17, 0
      %p106 = por %p104, %p105
      %p107 = scmp.ne.s32.totalorder %s93, %s94
      %p108 = scmp.eq.s32.totalorder %s18, 1
      %p109 = por %p107, %p108
      %p111 = scmp.ne.s32.totalorder %s94, %s110
      %p112 = scmp.eq.s32.totalorder %s18, 0
      %p113 = por %p111, %p112
      %p114 = scmp.le.s32.totalorder 1, %s12
      %p115 = scmp.lt.s32.totalorder %s12, 3
      %p116 = pnand %p114, %p115
      %p117 = pneg %p116
      // Predicated region
      $region9: #{tpu_custom_call.1} parent=5 // pred_check
        _
      $region10: #{tpu_custom_call.1} parent=5 // pred_check_branch
        %119 = sbr.rel (%p116) target = $region12
      $region11: #{tpu_custom_call.1} parent=5 // pred_region
        %s120 = ssub.s32 %s12, 1
        // Predicated region
        $region13: #{tpu_custom_call.1} parent=11 // pred_check
          %p121 = pneg %p59
        $region14: #{tpu_custom_call.1} parent=11 // pred_check_branch
          %123 = sbr.rel (%p121) target = $region16
        $region15: #{tpu_custom_call.1} parent=11 // pred_region
          _
        $region16: #{tpu_custom_call.1} parent=11 // pred_fallthru
          _
        // Predicated region
        $region17: #{tpu_custom_call.1} parent=11 // pred_check
          %p124 = pneg %p80
        $region18: #{tpu_custom_call.1} parent=11 // pred_check_branch
          %126 = sbr.rel (%p124) target = $region20
        $region19: #{tpu_custom_call.1} parent=11 // pred_region
          _
        $region20: #{tpu_custom_call.1} parent=11 // pred_fallthru
          _
      $region12: #{tpu_custom_call.1} parent=5 // pred_fallthru
        _
      %p127 = scmp.lt.s32.totalorder %s12, 2
      // Predicated region
      $region21: #{tpu_custom_call.1} parent=5 // pred_check
        %p128 = pneg %p127
      $region22: #{tpu_custom_call.1} parent=5 // pred_check_branch
        %130 = sbr.rel (%p128) target = $region24
      $region23: #{tpu_custom_call.1} parent=5 // pred_region
        // Predicated region
        $region25: #{tpu_custom_call.1} parent=23 // pred_check
          %p131 = pneg %p32
        $region26: #{tpu_custom_call.1} parent=23 // pred_check_branch
          %133 = sbr.rel (%p131) target = $region28
        $region27: #{tpu_custom_call.1} parent=23 // pred_region
          %p134 = scmp.lt.s32.totalorder %s12, 1
          %s135 = scalar_select %p134, %s12, 1
          %s136 = smul.addr %s135, 10
          %s137 = smul.addr %s136, 8
          %s138 = scalar_lea.vmem %s0, %s137
        $region28: #{tpu_custom_call.1} parent=23 // pred_fallthru
          _
      $region24: #{tpu_custom_call.1} parent=5 // pred_fallthru
        _
      %p139 = scmp.le.s32.totalorder 1, %s12
      %p140 = scmp.lt.s32.totalorder %s12, 3
      %p141 = pnand %p139, %p140
      %p142 = pneg %p141
      // Predicated region
      $region29: #{tpu_custom_call.1} parent=5 // pred_check
        _
      $region30: #{tpu_custom_call.1} parent=5 // pred_check_branch
        %144 = sbr.rel (%p141) target = $region32
      $region31: #{tpu_custom_call.1} parent=5 // pred_region
        %s145 = ssub.s32 %s12, 1
        %p146 = scmp.lt.s32.totalorder %s17, 1
        %s147 = scalar_select %p146, %s17, 1
        %s148 = smul.addr %s147, 10
        %s149 = smul.addr %s148, 8
        %s150 = scalar_lea.vmem %s0, %s149
        %p151 = pneg %p38
        %p152 = pneg %p35
        %p153 = pneg %p59
        %p154 = pneg %p56
        %p155 = pneg %p80
        %p156 = pneg %p77
        %p157 = pneg %p106
        %p158 = pneg %p103
        %s159 = sand.u32 %s93, 1
        %s160 = scalar_lea.sflag [#allocation3], %s159
        %s161 = sand.u32 %s93, 1
        %s162 = smul.addr %s161, 16
        %s163 = scalar_lea.vmem [#allocation2], %s162
        %p164 = scmp.lt.s32.totalorder %s17, 1
        %s165 = scalar_select %p164, %s17, 1
        %s166 = smul.addr %s165, 10
        %s167 = smul.addr %s166, 8
        %s168 = scalar_lea.vmem %s0, %s167
        %v169 = vld [vmem:[%s1] sm:$0xff]
        %v170 = vld [vmem:[%s168] sm:$0xff]
        %v171 = vld [vmem:[%s168 + $0x8] sm:$0xff]
        %v172 = vld [vmem:[%s168 + $0x10] sm:$0xff]
        %v173 = vld [vmem:[%s168 + $0x18] sm:$0xff]
        %v174 = vld [vmem:[%s168 + $0x20] sm:$0xff]
        %v175 = vld [vmem:[%s168 + $0x28] sm:$0xff]
        %v176 = vld [vmem:[%s168 + $0x30] sm:$0xff]
        %v177 = vld [vmem:[%s168 + $0x38] sm:$0xff]
        %v178 = vld [vmem:[%s168 + $0x40] sm:$0xf]
        %v179 = vld [vmem:[%s168 + $0x48] sm:$0xf]
        %vm180 = vcmask 293888
        %v182 = vsel %vm180, %v169, 0
        %vm184 = vcmask 1043456
        %v186 = vsel %vm184, %v178, 0
        %v189 = vsel %vm184, %v179, 0
        %191 = vmatpush.msra.mxu0 0.0
        %192 = vmatpush.msra.mxu0 0.0
        %193 = vmatpush.msra.mxu0 0.0
        %194 = vmatpush.msra.mxu0 0.0
        %195 = vmatpush.msra.mxu0 0.0
        %196 = vmatpush.msra.mxu0 0.0
        %197 = vmatpush.msra.mxu0 0.0
        %198 = vmatpush.msra.mxu0 0.0
        %199 = vmatpush.msra.mxu0 0.0
        %200 = vmatpush.msra.mxu0 0.0
        %201 = vmatpush.msra.mxu0 0.0
        %202 = vmatpush.msra.mxu0 %v186
        %203 = vmatpush.msra.mxu0 %v176
        %204 = vmatpush.msra.mxu0 %v174
        %205 = vmatpush.msra.mxu0 %v172
        %206 = vmatpush.msra.mxu0 %v170
        %207 = vmatmul.f32.gmra.mxu0 %v182
        %v208 = vpop.f32.mrf.mxu0
        %v209 = vadd.f32 0.0, %v208
        %210 = vdwg.mxu0
        %211 = vmatpush.msra.mxu0 0.0
        %212 = vmatpush.msra.mxu0 0.0
        %213 = vmatpush.msra.mxu0 0.0
        %214 = vmatpush.msra.mxu0 0.0
        %215 = vmatpush.msra.mxu0 0.0
        %216 = vmatpush.msra.mxu0 0.0
        %217 = vmatpush.msra.mxu0 0.0
        %218 = vmatpush.msra.mxu0 0.0
        %219 = vmatpush.msra.mxu0 0.0
        %220 = vmatpush.msra.mxu0 0.0
        %221 = vmatpush.msra.mxu0 0.0
        %222 = vmatpush.msra.mxu0 %v189
        %223 = vmatpush.msra.mxu0 %v177
        %224 = vmatpush.msra.mxu0 %v175
        %225 = vmatpush.msra.mxu0 %v173
        %226 = vmatpush.msra.mxu0 %v171
        %227 = vmatmul.f32.gmra.mxu0 %v182
        %v228 = vpop.f32.mrf.mxu0
        %v229 = vadd.f32 0.0, %v228
        %230 = vdwg.mxu0
        %v231 = vadd.f32 %v209, %v229
        %232 = vadd.xlane.f32.xlu0 %v231
        %v233 = vpop.xlane.xlu0 %232
        %v234 = vmul.f32 %v233, 0.00390625
        %v235 = vsub.f32 %v209, %v234
        %v236 = vsub.f32 %v229, %v234
        %v237 = vmul.f32 %v235, %v235
        %v238 = vmul.f32 %v236, %v236
        %v239 = vadd.f32 %v237, %v238
        %240 = vadd.xlane.f32.xlu0 %v239
        %v241 = vpop.xlane.xlu0 %240
        %v242 = vmul.f32 %v241, 0.00390625
        %v243 = vadd.f32 %v242, 1e-05
        %v244 = vrsqrt.pop %v243
        %v245 = vmul.f32 %v244, %v243
        %v246 = vmul.f32 %v245, %v244
        %v247 = vmul.f32 0.5, %v246
        %v248 = vsub.f32 1.5, %v247
        %v249 = vmul.f32 %v244, %v248
        %vm250 = vweird.f32 %v243
        %vm251 = vweird.f32 %v244
        %vm252 = vmor %vm250, %vm251
        %v253 = vsel %vm252, %v244, %v249
        %v254 = vld [vmem:[%s2] sm:$0xff]
        %v255 = vmul.f32 %v253, %v254
        %257 = vset.pattern.permute.xlu0 0
        %258 = vperm.xlu0 %257, %v255
        %v259 = vpop.permute.xlu0 %258
        %v261 = vmul.f32 %v235, %v259
        %v262 = vmul.f32 %v236, %v259
        %264 = vset.pattern.permute.xlu0 1
        %265 = vperm.xlu0 %264, %v254
        %v266 = vpop.permute.xlu0 %265
        %v268 = vadd.f32 %v261, %v266
        %v269 = vadd.f32 %v262, %v266
        %270 = vst [vmem:[%s163] sm:$0xff] %v268
        %271 = vst [vmem:[%s163 + $0x8] sm:$0xff] %v269
        %s272 = sand.u32 %s93, 1
        %s273 = scalar_lea.sflag [#allocation3], %s272
        %s274 = sand.u32 %s93, 1
        %s275 = smul.addr %s274, 16
        %s276 = scalar_lea.vmem [#allocation2], %s275
        // Predicated region
        $region33: #{tpu_custom_call.1} parent=31 // pred_check
          %p277 = pneg %p103
        $region34: #{tpu_custom_call.1} parent=31 // pred_check_branch
          %279 = sbr.rel (%p277) target = $region36
        $region35: #{tpu_custom_call.1} parent=31 // pred_region
          %281 = vsyncadd %s273, 0
          %s282 = smul.addr %s17, 2
          %s283 = smul.addr %s282, 8
          %s284 = scalar_lea.hbm %s3, %s283
          %s286 = sshll.u32 %s276, 4
          %s287 = int_to_ptr.vmem [resolvable:$true] %s286
          %s288 = sshll.u32 %s284, 4
          %s289 = int_to_ptr.hbm [resolvable:$true] %s288
          %291 = dma.vmem_to_hbm [thread:$0]  %s287, 256, %s289, %s273
        $region36: #{tpu_custom_call.1} parent=31 // pred_fallthru
          _
      $region32: #{tpu_custom_call.1} parent=5 // pred_fallthru
        _
      %p292 = scmp.le.s32.totalorder 2, %s12
      // Predicated region
      $region37: #{tpu_custom_call.1} parent=5 // pred_check
        %p293 = pneg %p292
      $region38: #{tpu_custom_call.1} parent=5 // pred_check_branch
        %295 = sbr.rel (%p293) target = $region40
      $region39: #{tpu_custom_call.1} parent=5 // pred_region
        %s296 = ssub.s32 %s12, 2
        // Predicated region
        $region41: #{tpu_custom_call.1} parent=39 // pred_check
          %p297 = pneg %p109
        $region42: #{tpu_custom_call.1} parent=39 // pred_check_branch
          %299 = sbr.rel (%p297) target = $region44
        $region43: #{tpu_custom_call.1} parent=39 // pred_region
          %s300 = sand.u32 %s94, 1
          %s301 = scalar_lea.sflag [#allocation3], %s300
          %s302 = sand.u32 %s94, 1
          %s303 = smul.addr %s302, 16
          %s304 = scalar_lea.vmem [#allocation2], %s303
          %306 = dma.done %s301, 256
        $region44: #{tpu_custom_call.1} parent=39 // pred_fallthru
          _
      $region40: #{tpu_custom_call.1} parent=5 // pred_fallthru
        _
    $region6: #{tpu_custom_call.1} parent=1 // loop_footer
      %s16 = sadd.s32 1, %s12
    $region7: #{tpu_custom_call.1} parent=1 // loop_footer_branch
      %11 = sbr.rel target = $region3
    $region8: #{tpu_custom_call.1} parent=1 // loop_exit
      _
    %307 = vsyncpa [#allocation3], 1
    %s308 = scalar_lea.sflag [#allocation3], 1
    %309 = vsyncpa %s308, 1

</llo_original>
